<compile_context>
chip_gen: v6e
topology: v6e:2x2x1
jax: 0.10.0
libtpu: 0.0.40
codegen_flags: <defaults>
</compile_context>

<pallas_src>
import jax
import jax.numpy as jnp
from jax.experimental import pallas as pl
from jax.experimental.pallas import tpu as pltpu

# Small synthetic configuration (non-plus / non-SDXL path of IPAdapterModel).
B = 2            # UNet batch (cond + uncond)
B_CLIP = 1       # clip-vision batch
CLIP_DIM = 64    # clip_embeddings_dim
CROSS_DIM = 64   # cross_attention_dim
TOKENS = 4       # clip_extra_context_tokens (module default)
HEADS = 8
HEAD_DIM = 16
CHANNEL = HEADS * HEAD_DIM   # to_kvs[n] out_features for this attn block (=128, lane-dense)
SEQ_Q = 64
LN_EPS = 1e-5

_VMEM = pl.BlockSpec(memory_space=pltpu.MemorySpace.VMEM)
_SMEM = pl.BlockSpec(memory_space=pltpu.MemorySpace.SMEM)


# ----------------------------------------------------------------------------
# Kernel 1 (hook-time): ImageProjModel.forward
#   Linear -> reshape(tokens, D) -> LayerNorm, emitted as one lane-dense store.
# ----------------------------------------------------------------------------
def _image_proj_kernel(x_ref, w_ref, b_ref, g_ref, beta_ref, out_ref):
    x = x_ref[...].astype(jnp.float32)                               # (Bc, clip)
    # y = x @ W.T + b
    y = jax.lax.dot_general(x, w_ref[...], (((1,), (1,)), ((), ())),
                            preferred_element_type=jnp.float32)      # (Bc, T*D)
    y = y + b_ref[...]
    parts = []
    for t in range(TOKENS):                                          # static unroll
        yt = y[:, t * CROSS_DIM:(t + 1) * CROSS_DIM]                 # (Bc, D)
        mu = jnp.mean(yt, axis=-1, keepdims=True)
        var = jnp.mean((yt - mu) ** 2, axis=-1, keepdims=True)
        parts.append((yt - mu) * jax.lax.rsqrt(var + LN_EPS)
                     * g_ref[...] + beta_ref[...])
    # One lane-dense (Bc, TOKENS*CROSS_DIM) store instead of TOKENS masked
    # 3-D partial stores; the (Bc, T, D) reshape happens in the wrapper.
    out_ref[...] = jnp.concatenate(parts, axis=-1).astype(out_ref.dtype)


def image_proj(clip_embeds, proj_w, proj_b, ln_g, ln_b):
    """ImageProjModel.forward: Linear -> reshape(tokens, D) -> LayerNorm."""
    bc = clip_embeds.shape[0]
    flat = pl.pallas_call(
        _image_proj_kernel,
        out_shape=jax.ShapeDtypeStruct((bc, TOKENS * CROSS_DIM), jnp.float32),
        in_specs=[_VMEM] * 5,
        out_specs=_VMEM,
    )(clip_embeds, proj_w, proj_b.reshape(1, -1),
      ln_g.reshape(1, -1), ln_b.reshape(1, -1))
    return flat.reshape(bc, TOKENS, CROSS_DIM)


def uncond_image_embeds(proj_b, ln_g, ln_b):
    """image_proj(zeros) == LayerNorm(proj.bias) reshaped — a per-checkpoint
    constant, so compute it once instead of a second kernel launch."""
    y = proj_b.astype(jnp.float32).reshape(1, TOKENS, CROSS_DIM)
    mu = y.mean(-1, keepdims=True)
    var = ((y - mu) ** 2).mean(-1, keepdims=True)
    return (y - mu) * jax.lax.rsqrt(var + LN_EPS) * ln_g + ln_b


# ----------------------------------------------------------------------------
# Kernel 2 (hook-time): hoisted to_k_ip / to_v_ip for cond & uncond embeddings.
#   Valid by linearity (no bias): blend(K_cond, K_uncond) == K(blend(emb)).
# ----------------------------------------------------------------------------
def _ip_kv_precompute_kernel(emb_ref, wkv_ref, kv_ref):
    # emb_ref: (2, T, D)   axis 0 = [cond, uncond]
    # wkv_ref: (2C, D)     rows [0,C) = to_k_ip.weight, rows [C,2C) = to_v_ip.weight
    # kv_ref : (2, T, 2C)
    for i in range(2):                                               # static unroll
        e = emb_ref[i].astype(jnp.float32)                           # (T, D)
        kv = jax.lax.dot_general(e, wkv_ref[...], (((1,), (1,)), ((), ())),
                                 preferred_element_type=jnp.float32)  # (T, 2C)
        kv_ref[i] = kv.astype(kv_ref.dtype)                          # lane-dense store


def precompute_ip_kv(image_emb, uncond_image_emb, wk, wv):
    """Hook-time hoist: K/V depend only on the (un)cond image embedding and the
    bias-free per-block weights, so compute them once per generation.
    to_k_ip and to_v_ip are fused into one (T, D) x (D, 2C) matmul."""
    emb = jnp.concatenate([image_emb[:1], uncond_image_emb[:1]], axis=0)   # (2, T, D)
    wkv = jnp.concatenate([wk, wv], axis=0).astype(jnp.float32)            # (2C, D)
    kv = pl.pallas_call(
        _ip_kv_precompute_kernel,
        out_shape=jax.ShapeDtypeStruct((2, TOKENS, 2 * CHANNEL), jnp.float32),
        in_specs=[_VMEM, _VMEM],
        out_specs=_VMEM,
    )(emb.astype(jnp.float32), wkv)
    # One-time layout plumbing (plain XLA): split k/v and go head-major so the
    # hot kernel never has to lane-slice heads out of a (T, C) tile.
    k = kv[:, :, :CHANNEL].reshape(2, TOKENS, HEADS, HEAD_DIM).transpose(0, 2, 1, 3)
    v = kv[:, :, CHANNEL:].reshape(2, TOKENS, HEADS, HEAD_DIM).transpose(0, 2, 1, 3)
    return k, v     # each (2, HEADS, TOKENS, HEAD_DIM), axis 0 = [cond, uncond]


# ----------------------------------------------------------------------------
# Kernel 3 (hot path): patch_forward — blend precomputed K/V + SDPA + gate.
#   Single grid-less invocation covering the whole UNet batch.
# ----------------------------------------------------------------------------
def _ip_attn_kernel(cm_ref, gate_ref, k_ref, v_ref, q_ref, out_ref):
    # cm_ref  : (B,)   cond_mark[:, 0, 0, 0]                (SMEM scalars)
    # gate_ref: (1,)   self.weight                          (SMEM scalar)
    # k_ref/v_ref: (2, H, T, hd) precomputed cond/uncond K / V
    # q_ref   : (B, H, Sq, hd)
    # out_ref : (B, Sq, H*hd)
    gate = gate_ref[0]
    scale = 1.0 / jnp.sqrt(jnp.float32(HEAD_DIM))
    kc = k_ref[0]                                                    # (H, T, hd)
    ku = k_ref[1]
    vc = v_ref[0]
    vu = v_ref[1]
    for b in range(B):                      # static unroll over the tiny UNet batch
        cm = cm_ref[b]
        # Fold the SDPA 1/sqrt(hd) scale into the K blend scalars and the
        # output gate (self.weight) into the V blend scalars — the cond/uncond
        # blend is then the only VPU work besides the two MXU matmuls, and no
        # post-matmul elementwise multiplies remain on the big tiles.
        ks_c = scale * cm
        ks_u = scale * (1.0 - cm)
        vs_c = gate * cm
        vs_u = gate * (1.0 - cm)
        kb = kc * ks_c + ku * ks_u                                   # (H, T, hd)
        vb = vc * vs_c + vu * vs_u                                   # (H, T, hd)
        qb = q_ref[b].astype(jnp.float32)                            # (H, Sq, hd)
        # heads as a dot_general batch dim: no per-head lane slices in matmuls.
        logits = jax.lax.dot_general(qb, kb, (((2,), (2,)), ((0,), (0,))),
                                     preferred_element_type=jnp.float32)  # (H,Sq,T)
        probs = jax.nn.softmax(logits, axis=-1)                           # (H,Sq,T)
        ob = jax.lax.dot_general(probs, vb, (((2,), (1,)), ((0,), (0,))),
                                 preferred_element_type=jnp.float32)      # (H,Sq,hd)
        # Head merge as a lane concat + ONE lane-dense (Sq, H*hd=128) store per
        # batch element (previous version did HEADS masked (Sq, hd=16) stores).
        merged = jnp.concatenate([ob[h] for h in range(HEADS)], axis=-1)  # (Sq, H*hd)
        out_ref[b] = merged.astype(out_ref.dtype)


def ip_adapter_patch(k_ip, v_ip, cond_mark, q, weight,
                     current_sampling_percent=0.5, p_start=0.0, p_end=1.0):
    """Equivalent of PlugableIPAdapter.patch_forward(number)(attn_blk, x, q),
    with the to_k_ip/to_v_ip linears hoisted into precompute_ip_kv."""
    if current_sampling_percent < p_start or current_sampling_percent > p_end:
        # torch returns the python scalar 0 (added to the attention output);
        # here we return a zero tensor of ip_out's shape in q's dtype.
        return jnp.zeros((q.shape[0], q.shape[2], q.shape[1] * q.shape[3]), q.dtype)

    bq, h, sq, hd = q.shape
    cm = cond_mark[:, 0, 0, 0].astype(jnp.float32)           # cond_mark[:, :, :, 0]
    gate = jnp.asarray([weight], jnp.float32)
    return pl.pallas_call(
        _ip_attn_kernel,
        out_shape=jax.ShapeDtypeStruct((bq, sq, h * hd), jnp.float32),
        in_specs=[_SMEM, _SMEM, _VMEM, _VMEM, _VMEM],
        out_specs=_VMEM,
    )(cm, gate, k_ip, v_ip, q)


# ----------------------------------------------------------------------------
# Plain-JAX reference of the torch math (for verification only)
# ----------------------------------------------------------------------------
def _ref_image_proj(x, w, b, g, be):
    y = x @ w.T + b
    y = y.reshape(x.shape[0], TOKENS, CROSS_DIM)
    mu = y.mean(-1, keepdims=True)
    var = ((y - mu) ** 2).mean(-1, keepdims=True)
    return (y - mu) / jnp.sqrt(var + LN_EPS) * g + be


def _ref_patch(img, uimg, cond_mark, wk, wv, q, weight):
    cm = cond_mark[:, :, :, 0]
    blend = img * cm + uimg * (1.0 - cm)
    k = jnp.einsum('btd,cd->btc', blend, wk)
    v = jnp.einsum('btd,cd->btc', blend, wv)
    bq, t, c = k.shape
    k = k.reshape(bq, t, HEADS, HEAD_DIM).transpose(0, 2, 1, 3)
    v = v.reshape(bq, t, HEADS, HEAD_DIM).transpose(0, 2, 1, 3)
    logits = jnp.einsum('bhqd,bhkd->bhqk', q, k) / jnp.sqrt(jnp.float32(HEAD_DIM))
    p = jax.nn.softmax(logits, -1)
    o = jnp.einsum('bhqk,bhkd->bhqd', p, v)
    return o.transpose(0, 2, 1, 3).reshape(bq, SEQ_Q, c) * weight


# TODO(synk): UNet monkey-patching (set_model_attn2_replace / hack_blk), state_dict
# loading / To_KV registry, the per-layer python cache, and the is_plus
# Resampler/PerceiverAttention projection path are host-side plumbing / unused
# here, not kernel compute.

if __name__ == "__main__":
    key = jax.random.PRNGKey(0)
    ks = jax.random.split(key, 6)

    # Deterministic synthetic parameters (shapes per the module __init__).
    clip_embeds = jax.random.normal(ks[0], (B_CLIP, CLIP_DIM), jnp.float32)
    proj_w = jax.random.normal(ks[1], (TOKENS * CROSS_DIM, CLIP_DIM), jnp.float32) * 0.05
    proj_b = jax.random.normal(ks[2], (TOKENS * CROSS_DIM,), jnp.float32) * 0.05
    ln_g = jnp.ones((CROSS_DIM,), jnp.float32)     # torch LayerNorm default init
    ln_b = jnp.zeros((CROSS_DIM,), jnp.float32)
    wk = jax.random.normal(ks[3], (CHANNEL, CROSS_DIM), jnp.float32) * 0.05
    wv = jax.random.normal(ks[4], (CHANNEL, CROSS_DIM), jnp.float32) * 0.05
    q = jax.random.normal(ks[5], (B, HEADS, SEQ_Q, HEAD_DIM), jnp.float32)
    cond_mark = jnp.stack([jnp.ones((1, 1, 1), jnp.float32),
                           jnp.zeros((1, 1, 1), jnp.float32)], axis=0)  # [B,1,1,1]
    weight = 0.8

    # hook(): get_image_embeds + per-block K/V precompute (once per generation).
    image_emb = image_proj(clip_embeds, proj_w, proj_b, ln_g, ln_b)
    uncond_image_emb = uncond_image_embeds(proj_b, ln_g, ln_b)
    k_ip, v_ip = precompute_ip_kv(image_emb, uncond_image_emb, wk, wv)

    # patch_forward(number)(attn_blk, x, q): the per-UNet-call hot path.
    ip_out = ip_adapter_patch(k_ip, v_ip, cond_mark, q, weight)
    jax.block_until_ready(ip_out)

    # Verify against the plain-JAX transcription of the torch math.
    ref_img = _ref_image_proj(clip_embeds, proj_w, proj_b, ln_g, ln_b)
    ref_uimg = _ref_image_proj(jnp.zeros_like(clip_embeds), proj_w, proj_b, ln_g, ln_b)
    ref_out = _ref_patch(ref_img, ref_uimg, cond_mark, wk, wv, q, weight)
    assert jnp.allclose(image_emb, ref_img, atol=1e-4, rtol=1e-4)
    assert jnp.allclose(uncond_image_emb, ref_uimg, atol=1e-4, rtol=1e-4)
    assert jnp.allclose(ip_out, ref_out, atol=1e-4, rtol=1e-4)

    print("KERNEL_OK")
</pallas_src>

<mosaic_0001>
module attributes {stable_mosaic.version = 11 : i64} {
  func.func @_image_proj_kernel(%arg0: memref<1x64xf32, #tpu.memory_space<vmem>>, %arg1: memref<256x64xf32, #tpu.memory_space<vmem>>, %arg2: memref<1x256xf32, #tpu.memory_space<vmem>>, %arg3: memref<1x64xf32, #tpu.memory_space<vmem>>, %arg4: memref<1x64xf32, #tpu.memory_space<vmem>>, %arg5: memref<1x256xf32, #tpu.memory_space<vmem>>) attributes {dimension_semantics = [], scalar_prefetch = 0 : i64, scratch_operands = 0 : i64, tpu.core_type = #tpu.core_type<tc>} {
    %c0 = arith.constant 0 : index
    %c0_0 = arith.constant 0 : index
    %0 = vector.load %arg0[%c0, %c0_0] : memref<1x64xf32, #tpu.memory_space<vmem>>, vector<1x64xf32>
    %c0_1 = arith.constant 0 : index
    %c0_2 = arith.constant 0 : index
    %1 = vector.load %arg1[%c0_1, %c0_2] : memref<256x64xf32, #tpu.memory_space<vmem>>, vector<256x64xf32>
    %cst = arith.constant dense<0.000000e+00> : vector<1x256xf32>
    %2 = tpu.matmul %0, %1, %cst {dimension_numbers = #tpu.dot_dimension_numbers<[1], [1], [0], [0], [0, 0, 1, 0], [], []>} : vector<1x64xf32>, vector<256x64xf32>, vector<1x256xf32> -> vector<1x256xf32>
    %c0_3 = arith.constant 0 : index
    %c0_4 = arith.constant 0 : index
    %3 = vector.load %arg2[%c0_3, %c0_4] : memref<1x256xf32, #tpu.memory_space<vmem>>, vector<1x256xf32>
    %4 = arith.addf %2, %3 : vector<1x256xf32>
    %5 = vector.extract_strided_slice %4 {offsets = [0, 0], sizes = [1, 64], strides = [1, 1]} : vector<1x256xf32> to vector<1x64xf32>
    %cst_5 = arith.constant dense<0.000000e+00> : vector<1xf32>
    %6 = vector.multi_reduction <add>, %5, %cst_5 [1] : vector<1x64xf32> to vector<1xf32>
    %7 = vector.shape_cast %6 : vector<1xf32> to vector<1x1xf32>
    %cst_6 = arith.constant 6.400000e+01 : f32
    %8 = vector.broadcast %cst_6 : f32 to vector<1x1xf32>
    %9 = arith.divf %7, %8 : vector<1x1xf32>
    %10 = vector.broadcast %9 : vector<1x1xf32> to vector<1x64xf32>
    %11 = arith.subf %5, %10 : vector<1x64xf32>
    %12 = arith.mulf %11, %11 : vector<1x64xf32>
    %cst_7 = arith.constant dense<0.000000e+00> : vector<1xf32>
    %13 = vector.multi_reduction <add>, %12, %cst_7 [1] : vector<1x64xf32> to vector<1xf32>
    %14 = vector.shape_cast %13 : vector<1xf32> to vector<1x1xf32>
    %cst_8 = arith.constant 6.400000e+01 : f32
    %15 = vector.broadcast %cst_8 : f32 to vector<1x1xf32>
    %16 = arith.divf %14, %15 : vector<1x1xf32>
    %17 = vector.broadcast %9 : vector<1x1xf32> to vector<1x64xf32>
    %18 = arith.subf %5, %17 : vector<1x64xf32>
    %cst_9 = arith.constant 9.99999974E-6 : f32
    %19 = vector.broadcast %cst_9 : f32 to vector<1x1xf32>
    %20 = arith.addf %16, %19 : vector<1x1xf32>
    %21 = math.rsqrt %20 : vector<1x1xf32>
    %22 = vector.broadcast %21 : vector<1x1xf32> to vector<1x64xf32>
    %23 = arith.mulf %18, %22 : vector<1x64xf32>
    %c0_10 = arith.constant 0 : index
    %c0_11 = arith.constant 0 : index
    %24 = vector.load %arg3[%c0_10, %c0_11] : memref<1x64xf32, #tpu.memory_space<vmem>>, vector<1x64xf32>
    %25 = arith.mulf %23, %24 : vector<1x64xf32>
    %c0_12 = arith.constant 0 : index
    %c0_13 = arith.constant 0 : index
    %26 = vector.load %arg4[%c0_12, %c0_13] : memref<1x64xf32, #tpu.memory_space<vmem>>, vector<1x64xf32>
    %27 = arith.addf %25, %26 : vector<1x64xf32>
    %28 = vector.extract_strided_slice %4 {offsets = [0, 64], sizes = [1, 64], strides = [1, 1]} : vector<1x256xf32> to vector<1x64xf32>
    %cst_14 = arith.constant dense<0.000000e+00> : vector<1xf32>
    %29 = vector.multi_reduction <add>, %28, %cst_14 [1] : vector<1x64xf32> to vector<1xf32>
    %30 = vector.shape_cast %29 : vector<1xf32> to vector<1x1xf32>
    %cst_15 = arith.constant 6.400000e+01 : f32
    %31 = vector.broadcast %cst_15 : f32 to vector<1x1xf32>
    %32 = arith.divf %30, %31 : vector<1x1xf32>
    %33 = vector.broadcast %32 : vector<1x1xf32> to vector<1x64xf32>
    %34 = arith.subf %28, %33 : vector<1x64xf32>
    %35 = arith.mulf %34, %34 : vector<1x64xf32>
    %cst_16 = arith.constant dense<0.000000e+00> : vector<1xf32>
    %36 = vector.multi_reduction <add>, %35, %cst_16 [1] : vector<1x64xf32> to vector<1xf32>
    %37 = vector.shape_cast %36 : vector<1xf32> to vector<1x1xf32>
    %cst_17 = arith.constant 6.400000e+01 : f32
    %38 = vector.broadcast %cst_17 : f32 to vector<1x1xf32>
    %39 = arith.divf %37, %38 : vector<1x1xf32>
    %40 = vector.broadcast %32 : vector<1x1xf32> to vector<1x64xf32>
    %41 = arith.subf %28, %40 : vector<1x64xf32>
    %cst_18 = arith.constant 9.99999974E-6 : f32
    %42 = vector.broadcast %cst_18 : f32 to vector<1x1xf32>
    %43 = arith.addf %39, %42 : vector<1x1xf32>
    %44 = math.rsqrt %43 : vector<1x1xf32>
    %45 = vector.broadcast %44 : vector<1x1xf32> to vector<1x64xf32>
    %46 = arith.mulf %41, %45 : vector<1x64xf32>
    %c0_19 = arith.constant 0 : index
    %c0_20 = arith.constant 0 : index
    %47 = vector.load %arg3[%c0_19, %c0_20] : memref<1x64xf32, #tpu.memory_space<vmem>>, vector<1x64xf32>
    %48 = arith.mulf %46, %47 : vector<1x64xf32>
    %c0_21 = arith.constant 0 : index
    %c0_22 = arith.constant 0 : index
    %49 = vector.load %arg4[%c0_21, %c0_22] : memref<1x64xf32, #tpu.memory_space<vmem>>, vector<1x64xf32>
    %50 = arith.addf %48, %49 : vector<1x64xf32>
    %51 = vector.extract_strided_slice %4 {offsets = [0, 128], sizes = [1, 64], strides = [1, 1]} : vector<1x256xf32> to vector<1x64xf32>
    %cst_23 = arith.constant dense<0.000000e+00> : vector<1xf32>
    %52 = vector.multi_reduction <add>, %51, %cst_23 [1] : vector<1x64xf32> to vector<1xf32>
    %53 = vector.shape_cast %52 : vector<1xf32> to vector<1x1xf32>
    %cst_24 = arith.constant 6.400000e+01 : f32
    %54 = vector.broadcast %cst_24 : f32 to vector<1x1xf32>
    %55 = arith.divf %53, %54 : vector<1x1xf32>
    %56 = vector.broadcast %55 : vector<1x1xf32> to vector<1x64xf32>
    %57 = arith.subf %51, %56 : vector<1x64xf32>
    %58 = arith.mulf %57, %57 : vector<1x64xf32>
    %cst_25 = arith.constant dense<0.000000e+00> : vector<1xf32>
    %59 = vector.multi_reduction <add>, %58, %cst_25 [1] : vector<1x64xf32> to vector<1xf32>
    %60 = vector.shape_cast %59 : vector<1xf32> to vector<1x1xf32>
    %cst_26 = arith.constant 6.400000e+01 : f32
    %61 = vector.broadcast %cst_26 : f32 to vector<1x1xf32>
    %62 = arith.divf %60, %61 : vector<1x1xf32>
    %63 = vector.broadcast %55 : vector<1x1xf32> to vector<1x64xf32>
    %64 = arith.subf %51, %63 : vector<1x64xf32>
    %cst_27 = arith.constant 9.99999974E-6 : f32
    %65 = vector.broadcast %cst_27 : f32 to vector<1x1xf32>
    %66 = arith.addf %62, %65 : vector<1x1xf32>
    %67 = math.rsqrt %66 : vector<1x1xf32>
    %68 = vector.broadcast %67 : vector<1x1xf32> to vector<1x64xf32>
    %69 = arith.mulf %64, %68 : vector<1x64xf32>
    %c0_28 = arith.constant 0 : index
    %c0_29 = arith.constant 0 : index
    %70 = vector.load %arg3[%c0_28, %c0_29] : memref<1x64xf32, #tpu.memory_space<vmem>>, vector<1x64xf32>
    %71 = arith.mulf %69, %70 : vector<1x64xf32>
    %c0_30 = arith.constant 0 : index
    %c0_31 = arith.constant 0 : index
    %72 = vector.load %arg4[%c0_30, %c0_31] : memref<1x64xf32, #tpu.memory_space<vmem>>, vector<1x64xf32>
    %73 = arith.addf %71, %72 : vector<1x64xf32>
    %74 = vector.extract_strided_slice %4 {offsets = [0, 192], sizes = [1, 64], strides = [1, 1]} : vector<1x256xf32> to vector<1x64xf32>
    %cst_32 = arith.constant dense<0.000000e+00> : vector<1xf32>
    %75 = vector.multi_reduction <add>, %74, %cst_32 [1] : vector<1x64xf32> to vector<1xf32>
    %76 = vector.shape_cast %75 : vector<1xf32> to vector<1x1xf32>
    %cst_33 = arith.constant 6.400000e+01 : f32
    %77 = vector.broadcast %cst_33 : f32 to vector<1x1xf32>
    %78 = arith.divf %76, %77 : vector<1x1xf32>
    %79 = vector.broadcast %78 : vector<1x1xf32> to vector<1x64xf32>
    %80 = arith.subf %74, %79 : vector<1x64xf32>
    %81 = arith.mulf %80, %80 : vector<1x64xf32>
    %cst_34 = arith.constant dense<0.000000e+00> : vector<1xf32>
    %82 = vector.multi_reduction <add>, %81, %cst_34 [1] : vector<1x64xf32> to vector<1xf32>
    %83 = vector.shape_cast %82 : vector<1xf32> to vector<1x1xf32>
    %cst_35 = arith.constant 6.400000e+01 : f32
    %84 = vector.broadcast %cst_35 : f32 to vector<1x1xf32>
    %85 = arith.divf %83, %84 : vector<1x1xf32>
    %86 = vector.broadcast %78 : vector<1x1xf32> to vector<1x64xf32>
    %87 = arith.subf %74, %86 : vector<1x64xf32>
    %cst_36 = arith.constant 9.99999974E-6 : f32
    %88 = vector.broadcast %cst_36 : f32 to vector<1x1xf32>
    %89 = arith.addf %85, %88 : vector<1x1xf32>
    %90 = math.rsqrt %89 : vector<1x1xf32>
    %91 = vector.broadcast %90 : vector<1x1xf32> to vector<1x64xf32>
    %92 = arith.mulf %87, %91 : vector<1x64xf32>
    %c0_37 = arith.constant 0 : index
    %c0_38 = arith.constant 0 : index
    %93 = vector.load %arg3[%c0_37, %c0_38] : memref<1x64xf32, #tpu.memory_space<vmem>>, vector<1x64xf32>
    %94 = arith.mulf %92, %93 : vector<1x64xf32>
    %c0_39 = arith.constant 0 : index
    %c0_40 = arith.constant 0 : index
    %95 = vector.load %arg4[%c0_39, %c0_40] : memref<1x64xf32, #tpu.memory_space<vmem>>, vector<1x64xf32>
    %96 = arith.addf %94, %95 : vector<1x64xf32>
    %97 = tpu.concatenate %27, %50, %73, %96 in 1 : vector<1x64xf32>, vector<1x64xf32>, vector<1x64xf32>, vector<1x64xf32> -> vector<1x256xf32>
    %c0_41 = arith.constant 0 : index
    %c0_42 = arith.constant 0 : index
    %98 = vector.load %arg5[%c0_41, %c0_42] : memref<1x256xf32, #tpu.memory_space<vmem>>, vector<1x256xf32>
    tpu.vector_store %arg5[%c0_41, %c0_42], %97 {strides = array<i32>} : memref<1x256xf32, #tpu.memory_space<vmem>>, vector<1x256xf32>,
    return
  }
}

</mosaic_0001>

<llo_original>
// kernel: tpu_custom_call.1
$region0: #{tpu_custom_call.1}
  #allocation0 [shape = 'u32[]', space=smem, size = 0x4, offset = 0x4, fixed_abs, tag = 'smem constant byte address 0x4 - core index']
  #allocation1 [shape = 'u32[144,128]{1,0:T(1,128)}', space=vmem, size = 0x12000, scoped, tag = 'internal scratch']
  %s0 = inlined_call_operand.vmem [shape: f32[1,64], index: 0, kind: input, shape index: {}]
  %s1 = inlined_call_operand.vmem [shape: f32[256,64], index: 1, kind: input, shape index: {}]
  %s2 = inlined_call_operand.vmem [shape: f32[1,256], index: 2, kind: input, shape index: {}]
  %s3 = inlined_call_operand.vmem [shape: f32[1,64], index: 3, kind: input, shape index: {}]
  %s4 = inlined_call_operand.vmem [shape: f32[1,64], index: 4, kind: input, shape index: {}]
  %s5 = inlined_call_operand.hbm [shape: f32[1,256], index: 5, kind: output, shape index: {}]
  %s6 = sld [smem:[#allocation0]]
  $region30: #{tpu_custom_call.1} parent=0
    _
  %s8 = ssub.s32 1, %s6
  %s9 = scalar_select 0, %s8, %s6
  $region1: #{tpu_custom_call.1} parent=0
    #allocation2 [shape = 'u8[1024]{0}', space=vmem, size = 0x400, scoped, tag = 'output window, operand 0, single buffered']
    #allocation3 [shape = 's32[1]{0}', space=sflag, size = 0x4, scoped, tag = 'scoped memory for tpu_custom_call.1']
    %10 = vsyncpa [#allocation3], 0
    // Predicated region
    $region2: #{tpu_custom_call.1} parent=1 // pred_check
      _
    $region3: #{tpu_custom_call.1} parent=1 // pred_check_branch
      %12 = sbr.rel (0) target = $region5
    $region4: #{tpu_custom_call.1} parent=1 // pred_region
      _
    $region5: #{tpu_custom_call.1} parent=1 // pred_fallthru
      _
    // Predicated region
    $region6: #{tpu_custom_call.1} parent=1 // pred_check
      _
    $region7: #{tpu_custom_call.1} parent=1 // pred_check_branch
      %14 = sbr.rel (0) target = $region9
    $region8: #{tpu_custom_call.1} parent=1 // pred_region
      _
    $region9: #{tpu_custom_call.1} parent=1 // pred_fallthru
      _
    // Predicated region
    $region10: #{tpu_custom_call.1} parent=1 // pred_check
      _
    $region11: #{tpu_custom_call.1} parent=1 // pred_check_branch
      %16 = sbr.rel (0) target = $region13
    $region12: #{tpu_custom_call.1} parent=1 // pred_region
      _
    $region13: #{tpu_custom_call.1} parent=1 // pred_fallthru
      _
    // Predicated region
    $region14: #{tpu_custom_call.1} parent=1 // pred_check
      _
    $region15: #{tpu_custom_call.1} parent=1 // pred_check_branch
      %18 = sbr.rel (0) target = $region17
    $region16: #{tpu_custom_call.1} parent=1 // pred_region
      _
    $region17: #{tpu_custom_call.1} parent=1 // pred_fallthru
      _
    // Predicated region
    $region18: #{tpu_custom_call.1} parent=1 // pred_check
      _
    $region19: #{tpu_custom_call.1} parent=1 // pred_check_branch
      %20 = sbr.rel (0) target = $region21
    $region20: #{tpu_custom_call.1} parent=1 // pred_region
      _
    $region21: #{tpu_custom_call.1} parent=1 // pred_fallthru
      _
    %v21 = vld [vmem:[%s0] sm:$0x1]
    %v22 = vld [vmem:[%s1] sm:$0xff]
    %v23 = vld [vmem:[%s1 + $0x8] sm:$0xff]
    %v24 = vld [vmem:[%s1 + $0x10] sm:$0xff]
    %v25 = vld [vmem:[%s1 + $0x18] sm:$0xff]
    %v26 = vld [vmem:[%s1 + $0x20] sm:$0xff]
    %v27 = vld [vmem:[%s1 + $0x28] sm:$0xff]
    %v28 = vld [vmem:[%s1 + $0x30] sm:$0xff]
    %v29 = vld [vmem:[%s1 + $0x38] sm:$0xff]
    %v30 = vld [vmem:[%s1 + $0x40] sm:$0xff]
    %v31 = vld [vmem:[%s1 + $0x48] sm:$0xff]
    %v32 = vld [vmem:[%s1 + $0x50] sm:$0xff]
    %v33 = vld [vmem:[%s1 + $0x58] sm:$0xff]
    %v34 = vld [vmem:[%s1 + $0x60] sm:$0xff]
    %v35 = vld [vmem:[%s1 + $0x68] sm:$0xff]
    %v36 = vld [vmem:[%s1 + $0x70] sm:$0xff]
    %v37 = vld [vmem:[%s1 + $0x78] sm:$0xff]
    %v38 = vld [vmem:[%s1 + $0x80] sm:$0xff]
    %v39 = vld [vmem:[%s1 + $0x88] sm:$0xff]
    %v40 = vld [vmem:[%s1 + $0x90] sm:$0xff]
    %v41 = vld [vmem:[%s1 + $0x98] sm:$0xff]
    %v42 = vld [vmem:[%s1 + $0xa0] sm:$0xff]
    %v43 = vld [vmem:[%s1 + $0xa8] sm:$0xff]
    %v44 = vld [vmem:[%s1 + $0xb0] sm:$0xff]
    %v45 = vld [vmem:[%s1 + $0xb8] sm:$0xff]
    %v46 = vld [vmem:[%s1 + $0xc0] sm:$0xff]
    %v47 = vld [vmem:[%s1 + $0xc8] sm:$0xff]
    %v48 = vld [vmem:[%s1 + $0xd0] sm:$0xff]
    %v49 = vld [vmem:[%s1 + $0xd8] sm:$0xff]
    %v50 = vld [vmem:[%s1 + $0xe0] sm:$0xff]
    %v51 = vld [vmem:[%s1 + $0xe8] sm:$0xff]
    %v52 = vld [vmem:[%s1 + $0xf0] sm:$0xff]
    %v53 = vld [vmem:[%s1 + $0xf8] sm:$0xff]
    %v54 = vld [vmem:[%s2] sm:$0x3]
    %v56 = vlaneseq
    %v57 = vshrl.u32 %v56, 7
    %v58 = vsub.s32 0, %v57
    %v59 = vrot.slane %v54, %v58
    %v60 = vlaneseq
    %v61 = vshrl.u32 %v60, 7
    %v62 = vsub.s32 1, %v61
    %v63 = vrot.slane %v54, %v62
    %vm66 = vcmask 523264
    %v68 = vsel %vm66, %v21, 0
    %v71 = vsel %vm66, %v22, 0
    %v74 = vsel %vm66, %v23, 0
    %v77 = vsel %vm66, %v24, 0
    %v80 = vsel %vm66, %v25, 0
    %v83 = vsel %vm66, %v26, 0
    %v86 = vsel %vm66, %v27, 0
    %v89 = vsel %vm66, %v28, 0
    %v92 = vsel %vm66, %v29, 0
    %v95 = vsel %vm66, %v30, 0
    %v98 = vsel %vm66, %v31, 0
    %v101 = vsel %vm66, %v32, 0
    %v104 = vsel %vm66, %v33, 0
    %v107 = vsel %vm66, %v34, 0
    %v110 = vsel %vm66, %v35, 0
    %v113 = vsel %vm66, %v36, 0
    %v116 = vsel %vm66, %v37, 0
    %v119 = vsel %vm66, %v38, 0
    %v122 = vsel %vm66, %v39, 0
    %v125 = vsel %vm66, %v40, 0
    %v128 = vsel %vm66, %v41, 0
    %v131 = vsel %vm66, %v42, 0
    %v134 = vsel %vm66, %v43, 0
    %v137 = vsel %vm66, %v44, 0
    %v140 = vsel %vm66, %v45, 0
    %v143 = vsel %vm66, %v46, 0
    %v146 = vsel %vm66, %v47, 0
    %v149 = vsel %vm66, %v48, 0
    %v152 = vsel %vm66, %v49, 0
    %v155 = vsel %vm66, %v50, 0
    %v158 = vsel %vm66, %v51, 0
    %v161 = vsel %vm66, %v52, 0
    %v164 = vsel %vm66, %v53, 0
    %166 = vmatprep.subr.mxu0 0.0
    %167 = vmatpush1.xpose.msra.mxu0 %v116
    %168 = vmatprep.subr.mxu0 0.0
    %169 = vmatpush1.xpose.msra.mxu0 %v113
    %170 = vmatprep.subr.mxu0 0.0
    %171 = vmatpush1.xpose.msra.mxu0 %v110
    %172 = vmatprep.subr.mxu0 0.0
    %173 = vmatpush1.xpose.msra.mxu0 %v107
    %174 = vmatprep.subr.mxu0 0.0
    %175 = vmatpush1.xpose.msra.mxu0 %v104
    %176 = vmatprep.subr.mxu0 0.0
    %177 = vmatpush1.xpose.msra.mxu0 %v101
    %178 = vmatprep.subr.mxu0 0.0
    %179 = vmatpush1.xpose.msra.mxu0 %v98
    %180 = vmatprep.subr.mxu0 0.0
    %181 = vmatpush1.xpose.msra.mxu0 %v95
    %182 = vmatprep.subr.mxu0 0.0
    %183 = vmatpush1.xpose.msra.mxu0 %v92
    %184 = vmatprep.subr.mxu0 0.0
    %185 = vmatpush1.xpose.msra.mxu0 %v89
    %186 = vmatprep.subr.mxu0 0.0
    %187 = vmatpush1.xpose.msra.mxu0 %v86
    %188 = vmatprep.subr.mxu0 0.0
    %189 = vmatpush1.xpose.msra.mxu0 %v83
    %190 = vmatprep.subr.mxu0 0.0
    %191 = vmatpush1.xpose.msra.mxu0 %v80
    %192 = vmatprep.subr.mxu0 0.0
    %193 = vmatpush1.xpose.msra.mxu0 %v77
    %194 = vmatprep.subr.mxu0 0.0
    %195 = vmatpush1.xpose.msra.mxu0 %v74
    %196 = vmatprep.subr.mxu0 0.0
    %197 = vmatpush1.xpose.msra.mxu0 %v71
    %198 = vmatprep.subr.mxu0 0.0
    %199 = vmatpush2.xpose.msra.mxu0 %v164
    %200 = vmatprep.subr.mxu0 0.0
    %201 = vmatpush2.xpose.msra.mxu0 %v161
    %202 = vmatprep.subr.mxu0 0.0
    %203 = vmatpush2.xpose.msra.mxu0 %v158
    %204 = vmatprep.subr.mxu0 0.0
    %205 = vmatpush2.xpose.msra.mxu0 %v155
    %206 = vmatprep.subr.mxu0 0.0
    %207 = vmatpush2.xpose.msra.mxu0 %v152
    %208 = vmatprep.subr.mxu0 0.0
    %209 = vmatpush2.xpose.msra.mxu0 %v149
    %210 = vmatprep.subr.mxu0 0.0
    %211 = vmatpush2.xpose.msra.mxu0 %v146
    %212 = vmatprep.subr.mxu0 0.0
    %213 = vmatpush2.xpose.msra.mxu0 %v143
    %214 = vmatprep.subr.mxu0 0.0
    %215 = vmatpush2.xpose.msra.mxu0 %v140
    %216 = vmatprep.subr.mxu0 0.0
    %217 = vmatpush2.xpose.msra.mxu0 %v137
    %218 = vmatprep.subr.mxu0 0.0
    %219 = vmatpush2.xpose.msra.mxu0 %v134
    %220 = vmatprep.subr.mxu0 0.0
    %221 = vmatpush2.xpose.msra.mxu0 %v131
    %222 = vmatprep.subr.mxu0 0.0
    %223 = vmatpush2.xpose.msra.mxu0 %v128
    %224 = vmatprep.subr.mxu0 0.0
    %225 = vmatpush2.xpose.msra.mxu0 %v125
    %226 = vmatprep.subr.mxu0 0.0
    %227 = vmatpush2.xpose.msra.mxu0 %v122
    %228 = vmatprep.subr.mxu0 0.0
    %229 = vmatpush2.xpose.msra.mxu0 %v119
    %230 = vmatprep.mubr.f32.mxu0 0.0
    %231 = vmatmul.mubr.f32.gmra.mxu0 %v68
    %v232 = vpop.f32.mrf.mxu0
    %v233 = vadd.f32 %v59, %v232
    %v234 = vpop.f32.mrf.mxu0
    %v235 = vadd.f32 %v63, %v234
    %236 = vdwg.mxu0
    %vm237 = vcmask 516096
    %v238 = vsel %vm237, %v233, 0.0
    %239 = vadd.xlane.f32.xlu0 %v238
    %v240 = vpop.xlane.xlu0 %239
    %v241 = vrcp.pop 64.0
    %v242 = vmul.f32 %v240, %v241
    %v243 = vsub.f32 %v233, %v242
    %v244 = vmul.f32 %v243, %v243
    %v245 = vsel %vm237, %v244, 0.0
    %246 = vadd.xlane.f32.xlu0 %v245
    %v247 = vpop.xlane.xlu0 %246
    %v248 = vmul.f32 %v247, %v241
    %v249 = vadd.f32 %v248, 1e-05
    %v250 = vrsqrt.pop %v249
    %v251 = vmul.f32 %v243, %v250
    %v252 = vld [vmem:[%s3] sm:$0x1]
    %v253 = vmul.f32 %v251, %v252
    %v254 = vld [vmem:[%s4] sm:$0x1]
    %v255 = vadd.f32 %v253, %v254
    %257 = vrot.lane.b32.xlu0 %v233, 64
    %v258 = vpop.permute.xlu0 %257
    %v260 = vsel %vm237, %v258, 0.0
    %261 = vadd.xlane.f32.xlu0 %v260
    %v262 = vpop.xlane.xlu0 %261
    %v263 = vmul.f32 %v262, %v241
    %v264 = vsub.f32 %v233, %v263
    %v265 = vmul.f32 %v264, %v264
    %267 = vrot.lane.b32.xlu0 %v265, 64
    %v268 = vpop.permute.xlu0 %267
    %v270 = vsel %vm237, %v268, 0.0
    %271 = vadd.xlane.f32.xlu0 %v270
    %v272 = vpop.xlane.xlu0 %271
    %v273 = vmul.f32 %v272, %v241
    %v274 = vadd.f32 %v273, 1e-05
    %v275 = vrsqrt.pop %v274
    %v276 = vmul.f32 %v264, %v275
    %v278 = vlaneseq
    %v279 = vshrl.u32 %v278, 7
    %v280 = vsub.s32 0, %v279
    %v281 = vrot.slane %v252, %v280
    %282 = vrot.lane.b32.xlu0 %v281, 64
    %v283 = vpop.permute.xlu0 %282
    %v285 = vmul.f32 %v276, %v283
    %v287 = vlaneseq
    %v288 = vshrl.u32 %v287, 7
    %v289 = vsub.s32 0, %v288
    %v290 = vrot.slane %v254, %v289
    %291 = vrot.lane.b32.xlu0 %v290, 64
    %v292 = vpop.permute.xlu0 %291
    %v294 = vadd.f32 %v285, %v292
    %v295 = vsel %vm237, %v235, 0.0
    %296 = vadd.xlane.f32.xlu0 %v295
    %v297 = vpop.xlane.xlu0 %296
    %v298 = vmul.f32 %v297, %v241
    %v299 = vsub.f32 %v235, %v298
    %v300 = vmul.f32 %v299, %v299
    %v301 = vsel %vm237, %v300, 0.0
    %302 = vadd.xlane.f32.xlu0 %v301
    %v303 = vpop.xlane.xlu0 %302
    %v304 = vmul.f32 %v303, %v241
    %v305 = vadd.f32 %v304, 1e-05
    %v306 = vrsqrt.pop %v305
    %v307 = vmul.f32 %v299, %v306
    %v308 = vmul.f32 %v307, %v252
    %v309 = vadd.f32 %v308, %v254
    %311 = vrot.lane.b32.xlu0 %v235, 64
    %v312 = vpop.permute.xlu0 %311
    %v314 = vsel %vm237, %v312, 0.0
    %315 = vadd.xlane.f32.xlu0 %v314
    %v316 = vpop.xlane.xlu0 %315
    %v317 = vmul.f32 %v316, %v241
    %v318 = vsub.f32 %v235, %v317
    %v319 = vmul.f32 %v318, %v318
    %321 = vrot.lane.b32.xlu0 %v319, 64
    %v322 = vpop.permute.xlu0 %321
    %v324 = vsel %vm237, %v322, 0.0
    %325 = vadd.xlane.f32.xlu0 %v324
    %v326 = vpop.xlane.xlu0 %325
    %v327 = vmul.f32 %v326, %v241
    %v328 = vadd.f32 %v327, 1e-05
    %v329 = vrsqrt.pop %v328
    %v330 = vmul.f32 %v318, %v329
    %v331 = vmul.f32 %v330, %v283
    %v332 = vadd.f32 %v331, %v292
    %v333 = vsel %vm66, %v255, %v294
    %v334 = vsel %vm66, %v309, %v332
    %v337 = vcombine.low %v333, %v334
    %v339 = vunpack.c.l.s4 1966171168
    %v340 = vunpack.c.0.s8 %v339
    %v341 = vlaneseq
    %v342 = vshrl.u32 %v341, 7
    %v343 = vsub.s32 %v340, %v342
    %v344 = vrot.slane %v337, %v343
    %v346 = vunpack.c.l.s4 1966171168
    %v347 = vunpack.c.0.s8 %v346
    %v348 = vlaneseq
    %v349 = vshrl.u32 %v348, 7
    %v350 = vsub.s32 %v347, %v349
    %v351 = vrot.slane %v344, %v350
    %v353 = vlaneseq
    %vm354 = vcmp.ge.s32.totalorder %v353, 0
    %vm355 = vcmp.lt.s32.totalorder %v353, 256
    %vm356 = vmand %vm354, %vm355
    %357 = vst.msk [vmem:[#allocation2] sm:$0x3] %vm356, %v351
    // Predicated region
    $region22: #{tpu_custom_call.1} parent=1 // pred_check
      _
    $region23: #{tpu_custom_call.1} parent=1 // pred_check_branch
      %359 = sbr.rel (0) target = $region25
    $region24: #{tpu_custom_call.1} parent=1 // pred_region
      %s361 = ssub.s32 32, 32
      %362 = vsyncadd [#allocation3], %s361
      %s364 = sshll.u32 [#allocation2], 4
      %s365 = int_to_ptr.vmem [resolvable:$true] %s364
      %367 = dma.vmem_to_hbm [thread:$0]  %s365, 32, %s5, [#allocation3]
    $region25: #{tpu_custom_call.1} parent=1 // pred_fallthru
      _
    // Predicated region
    $region26: #{tpu_custom_call.1} parent=1 // pred_check
      _
    $region27: #{tpu_custom_call.1} parent=1 // pred_check_branch
      %369 = sbr.rel (0) target = $region29
    $region28: #{tpu_custom_call.1} parent=1 // pred_region
      %370 = dma.done [#allocation3], 32
    $region29: #{tpu_custom_call.1} parent=1 // pred_fallthru
      _
    %371 = vsyncpa [#allocation3], 1

</llo_original>
